<compile_context>
chip_gen: v7x
topology: tpu7x:2x2x1
jax: 0.10.0
libtpu: 0.0.40
codegen_flags: <defaults>
</compile_context>

<pallas_src>
import jax
import jax.numpy as jnp
from jax import lax
from jax.experimental import pallas as pl
from jax.experimental.pallas import tpu as pltpu

HIDDEN_SIZE = 256  # fixed by the module's __init__
SUBLANE = 8        # f32 sublane tile


def rnn_recurrence_kernel(gates_ref, whh_ref, h_ref):
    """Full T-step tanh recurrence in a single kernel invocation.

    gates_ref: (T, Bp, H) VMEM — precomputed x_t @ W_ih^T + (b_ih + b_hh), time-major
    whh_ref:   (H, H)     VMEM — W_hh^T (right-multiply form)
    h_ref:     (Bp, H)    VMEM — final hidden state output
    """
    T = gates_ref.shape[0]
    whh = whh_ref[...]  # load once; resident for the whole loop

    def step(t, h):
        pre = gates_ref[t] + jnp.dot(h, whh, preferred_element_type=jnp.float32)
        return jnp.tanh(pre)

    h0 = jnp.zeros(h_ref.shape, jnp.float32)
    # Unrolled so the LLO scheduler can overlap EUP tanh latency of step t with
    # MXU/scalar work of step t+1; no per-step grid overhead.
    h_ref[...] = lax.fori_loop(0, T, step, h0, unroll=True)


def words_rnn_forward(x, w_ih, w_hh, b_ih, b_hh, w_out, b_out):
    """x: (B, T, F) batch_first like PyTorch. Returns (1, B, out_features)."""
    B, T, F = x.shape
    H = w_hh.shape[0]
    O = w_out.shape[0]

    w_out_f = w_out.astype(jnp.float32)
    b_out_f = b_out.astype(jnp.float32)

    if T == 0:
        # Degenerate sequence: nn.RNN would return h_0 = 0, so y = b_out.
        h_final = jnp.zeros((B, H), jnp.float32)
        y = h_final @ w_out_f.T + b_out_f
        return y[None, :, :]

    # --- pre-pass (plain JAX, full-occupancy batched matmul) -----------------
    # gates[t, b, :] = x[b, t, :] @ W_ih^T + (b_ih + b_hh); transpose to
    # time-major is fused into the einsum contraction.
    x_f32 = x.astype(jnp.float32)
    gates = jnp.einsum('btf,hf->tbh', x_f32, w_ih.astype(jnp.float32),
                       preferred_element_type=jnp.float32)
    gates = gates + (b_ih + b_hh).astype(jnp.float32)[None, None, :]

    # Pad batch to one full sublane tile so vregs / MXU row pushes are dense.
    B_pad = ((B + SUBLANE - 1) // SUBLANE) * SUBLANE
    if B_pad != B:
        gates = jnp.pad(gates, ((0, 0), (0, B_pad - B), (0, 0)))

    whh_t = jnp.transpose(w_hh).astype(jnp.float32)  # (H, H) right-multiply form

    # --- sequential recurrence: one pallas_call, everything VMEM-resident ----
    h_final = pl.pallas_call(
        rnn_recurrence_kernel,
        out_shape=jax.ShapeDtypeStruct((B_pad, H), jnp.float32),
        in_specs=[
            pl.BlockSpec(memory_space=pltpu.MemorySpace.VMEM),  # gates (T, Bp, H)
            pl.BlockSpec(memory_space=pltpu.MemorySpace.VMEM),  # W_hh^T (H, H)
        ],
        out_specs=pl.BlockSpec(memory_space=pltpu.MemorySpace.VMEM),
    )(gates, whh_t)

    h_final = h_final[:B]  # drop batch padding

    # --- final Linear on h_T (plain JAX; tiny, used once) --------------------
    y = h_final @ w_out_f.T + b_out_f
    return y[None, :, :]  # (1, B, O) — matches nn.Linear applied to h of nn.RNN


def words_rnn_reference(x, w_ih, w_hh, b_ih, b_hh, w_out, b_out):
    """Pure-JAX reference mirroring torch nn.RNN(batch_first=True) + Linear."""
    B, T, F = x.shape
    H = w_hh.shape[0]
    h = jnp.zeros((B, H), jnp.float32)
    for t in range(T):
        h = jnp.tanh(x[:, t, :] @ w_ih.T + b_ih + h @ w_hh.T + b_hh)
    y = h @ w_out.T + b_out
    return y[None, :, :]   # (1, B, O)


if __name__ == "__main__":
    # Small shapes consistent with the module's forward contract.
    batch, seq_len = 2, 8
    in_features, out_features = 32, 64
    H = HIDDEN_SIZE

    key = jax.random.PRNGKey(0)
    ks = jax.random.split(key, 8)
    scale = 1.0 / jnp.sqrt(H)   # matches torch's U(-1/sqrt(H), 1/sqrt(H)) init range

    x = jax.random.normal(ks[0], (batch, seq_len, in_features), jnp.float32)
    w_ih = jax.random.uniform(ks[1], (H, in_features), jnp.float32, -scale, scale)
    w_hh = jax.random.uniform(ks[2], (H, H), jnp.float32, -scale, scale)
    b_ih = jax.random.uniform(ks[3], (H,), jnp.float32, -scale, scale)
    b_hh = jax.random.uniform(ks[4], (H,), jnp.float32, -scale, scale)
    w_out = jax.random.uniform(ks[5], (out_features, H), jnp.float32, -scale, scale)
    b_out = jax.random.uniform(ks[6], (out_features,), jnp.float32, -scale, scale)

    y = words_rnn_forward(x, w_ih, w_hh, b_ih, b_hh, w_out, b_out)
    y = jax.block_until_ready(y)

    y_ref = words_rnn_reference(x, w_ih, w_hh, b_ih, b_hh, w_out, b_out)
    assert y.shape == (1, batch, out_features), y.shape
    assert jnp.allclose(y, y_ref, rtol=1e-5, atol=1e-5), "mismatch vs reference"

    print("KERNEL_OK")
</pallas_src>

<mosaic_0001>
module attributes {stable_mosaic.version = 11 : i64} {
  func.func @rnn_recurrence_kernel(%arg0: memref<8x8x256xf32, #tpu.memory_space<vmem>>, %arg1: memref<256x256xf32, #tpu.memory_space<vmem>>, %arg2: memref<8x256xf32, #tpu.memory_space<vmem>>) attributes {dimension_semantics = [], scalar_prefetch = 0 : i64, scratch_operands = 0 : i64, tpu.core_type = #tpu.core_type<tc>} {
    %c0 = arith.constant 0 : index
    %c0_0 = arith.constant 0 : index
    %0 = vector.load %arg1[%c0, %c0_0] : memref<256x256xf32, #tpu.memory_space<vmem>>, vector<256x256xf32>
    %cst = arith.constant 0.000000e+00 : f32
    %1 = vector.broadcast %cst : f32 to vector<8x256xf32>
    %c0_i32 = arith.constant 0 : i32
    %2 = arith.index_cast %c0_i32 : i32 to index
    %c0_1 = arith.constant 0 : index
    %c0_2 = arith.constant 0 : index
    %3 = vector.load %arg0[%2, %c0_1, %c0_2] : memref<8x8x256xf32, #tpu.memory_space<vmem>>, vector<1x8x256xf32>
    %4 = vector.shape_cast %3 : vector<1x8x256xf32> to vector<8x256xf32>
    %cst_3 = arith.constant dense<0.000000e+00> : vector<8x256xf32>
    %5 = tpu.matmul %1, %0, %cst_3 {dimension_numbers = #tpu.dot_dimension_numbers<[1], [0], [0], [1], [0, 0, 1, 1], [], []>} : vector<8x256xf32>, vector<256x256xf32>, vector<8x256xf32> -> vector<8x256xf32>
    %6 = arith.addf %4, %5 : vector<8x256xf32>
    %7 = math.tanh %6 : vector<8x256xf32>
    %c1_i32 = arith.constant 1 : i32
    %8 = arith.index_cast %c1_i32 : i32 to index
    %c0_4 = arith.constant 0 : index
    %c0_5 = arith.constant 0 : index
    %9 = vector.load %arg0[%8, %c0_4, %c0_5] : memref<8x8x256xf32, #tpu.memory_space<vmem>>, vector<1x8x256xf32>
    %10 = vector.shape_cast %9 : vector<1x8x256xf32> to vector<8x256xf32>
    %cst_6 = arith.constant dense<0.000000e+00> : vector<8x256xf32>
    %11 = tpu.matmul %7, %0, %cst_6 {dimension_numbers = #tpu.dot_dimension_numbers<[1], [0], [0], [1], [0, 0, 1, 1], [], []>} : vector<8x256xf32>, vector<256x256xf32>, vector<8x256xf32> -> vector<8x256xf32>
    %12 = arith.addf %10, %11 : vector<8x256xf32>
    %13 = math.tanh %12 : vector<8x256xf32>
    %c2_i32 = arith.constant 2 : i32
    %14 = arith.index_cast %c2_i32 : i32 to index
    %c0_7 = arith.constant 0 : index
    %c0_8 = arith.constant 0 : index
    %15 = vector.load %arg0[%14, %c0_7, %c0_8] : memref<8x8x256xf32, #tpu.memory_space<vmem>>, vector<1x8x256xf32>
    %16 = vector.shape_cast %15 : vector<1x8x256xf32> to vector<8x256xf32>
    %cst_9 = arith.constant dense<0.000000e+00> : vector<8x256xf32>
    %17 = tpu.matmul %13, %0, %cst_9 {dimension_numbers = #tpu.dot_dimension_numbers<[1], [0], [0], [1], [0, 0, 1, 1], [], []>} : vector<8x256xf32>, vector<256x256xf32>, vector<8x256xf32> -> vector<8x256xf32>
    %18 = arith.addf %16, %17 : vector<8x256xf32>
    %19 = math.tanh %18 : vector<8x256xf32>
    %c3_i32 = arith.constant 3 : i32
    %20 = arith.index_cast %c3_i32 : i32 to index
    %c0_10 = arith.constant 0 : index
    %c0_11 = arith.constant 0 : index
    %21 = vector.load %arg0[%20, %c0_10, %c0_11] : memref<8x8x256xf32, #tpu.memory_space<vmem>>, vector<1x8x256xf32>
    %22 = vector.shape_cast %21 : vector<1x8x256xf32> to vector<8x256xf32>
    %cst_12 = arith.constant dense<0.000000e+00> : vector<8x256xf32>
    %23 = tpu.matmul %19, %0, %cst_12 {dimension_numbers = #tpu.dot_dimension_numbers<[1], [0], [0], [1], [0, 0, 1, 1], [], []>} : vector<8x256xf32>, vector<256x256xf32>, vector<8x256xf32> -> vector<8x256xf32>
    %24 = arith.addf %22, %23 : vector<8x256xf32>
    %25 = math.tanh %24 : vector<8x256xf32>
    %c4_i32 = arith.constant 4 : i32
    %26 = arith.index_cast %c4_i32 : i32 to index
    %c0_13 = arith.constant 0 : index
    %c0_14 = arith.constant 0 : index
    %27 = vector.load %arg0[%26, %c0_13, %c0_14] : memref<8x8x256xf32, #tpu.memory_space<vmem>>, vector<1x8x256xf32>
    %28 = vector.shape_cast %27 : vector<1x8x256xf32> to vector<8x256xf32>
    %cst_15 = arith.constant dense<0.000000e+00> : vector<8x256xf32>
    %29 = tpu.matmul %25, %0, %cst_15 {dimension_numbers = #tpu.dot_dimension_numbers<[1], [0], [0], [1], [0, 0, 1, 1], [], []>} : vector<8x256xf32>, vector<256x256xf32>, vector<8x256xf32> -> vector<8x256xf32>
    %30 = arith.addf %28, %29 : vector<8x256xf32>
    %31 = math.tanh %30 : vector<8x256xf32>
    %c5_i32 = arith.constant 5 : i32
    %32 = arith.index_cast %c5_i32 : i32 to index
    %c0_16 = arith.constant 0 : index
    %c0_17 = arith.constant 0 : index
    %33 = vector.load %arg0[%32, %c0_16, %c0_17] : memref<8x8x256xf32, #tpu.memory_space<vmem>>, vector<1x8x256xf32>
    %34 = vector.shape_cast %33 : vector<1x8x256xf32> to vector<8x256xf32>
    %cst_18 = arith.constant dense<0.000000e+00> : vector<8x256xf32>
    %35 = tpu.matmul %31, %0, %cst_18 {dimension_numbers = #tpu.dot_dimension_numbers<[1], [0], [0], [1], [0, 0, 1, 1], [], []>} : vector<8x256xf32>, vector<256x256xf32>, vector<8x256xf32> -> vector<8x256xf32>
    %36 = arith.addf %34, %35 : vector<8x256xf32>
    %37 = math.tanh %36 : vector<8x256xf32>
    %c6_i32 = arith.constant 6 : i32
    %38 = arith.index_cast %c6_i32 : i32 to index
    %c0_19 = arith.constant 0 : index
    %c0_20 = arith.constant 0 : index
    %39 = vector.load %arg0[%38, %c0_19, %c0_20] : memref<8x8x256xf32, #tpu.memory_space<vmem>>, vector<1x8x256xf32>
    %40 = vector.shape_cast %39 : vector<1x8x256xf32> to vector<8x256xf32>
    %cst_21 = arith.constant dense<0.000000e+00> : vector<8x256xf32>
    %41 = tpu.matmul %37, %0, %cst_21 {dimension_numbers = #tpu.dot_dimension_numbers<[1], [0], [0], [1], [0, 0, 1, 1], [], []>} : vector<8x256xf32>, vector<256x256xf32>, vector<8x256xf32> -> vector<8x256xf32>
    %42 = arith.addf %40, %41 : vector<8x256xf32>
    %43 = math.tanh %42 : vector<8x256xf32>
    %c7_i32 = arith.constant 7 : i32
    %44 = arith.index_cast %c7_i32 : i32 to index
    %c0_22 = arith.constant 0 : index
    %c0_23 = arith.constant 0 : index
    %45 = vector.load %arg0[%44, %c0_22, %c0_23] : memref<8x8x256xf32, #tpu.memory_space<vmem>>, vector<1x8x256xf32>
    %46 = vector.shape_cast %45 : vector<1x8x256xf32> to vector<8x256xf32>
    %cst_24 = arith.constant dense<0.000000e+00> : vector<8x256xf32>
    %47 = tpu.matmul %43, %0, %cst_24 {dimension_numbers = #tpu.dot_dimension_numbers<[1], [0], [0], [1], [0, 0, 1, 1], [], []>} : vector<8x256xf32>, vector<256x256xf32>, vector<8x256xf32> -> vector<8x256xf32>
    %48 = arith.addf %46, %47 : vector<8x256xf32>
    %49 = math.tanh %48 : vector<8x256xf32>
    %c8_i32 = arith.constant 8 : i32
    %c0_25 = arith.constant 0 : index
    %c0_26 = arith.constant 0 : index
    %50 = vector.load %arg2[%c0_25, %c0_26] : memref<8x256xf32, #tpu.memory_space<vmem>>, vector<8x256xf32>
    tpu.vector_store %arg2[%c0_25, %c0_26], %49 {strides = array<i32>} : memref<8x256xf32, #tpu.memory_space<vmem>>, vector<8x256xf32>,
    return
  }
}

</mosaic_0001>

<llo_original>
// kernel: tpu_custom_call.1
$region0: #{tpu_custom_call.1}
  #allocation0 [shape = 'u32[]', space=smem, size = 0x4, offset = 0x4, fixed_abs, tag = 'smem constant byte address 0x4 - core index']
  #allocation1 [shape = 'u32[144,128]{1,0:T(1,128)}', space=vmem, size = 0x12000, scoped, tag = 'internal scratch']
  %s0 = inlined_call_operand.hbm [shape: f32[8,8,256], index: 0, kind: input, shape index: {}]
  %s1 = inlined_call_operand.hbm [shape: f32[256,256], index: 1, kind: input, shape index: {}]
  %s2 = inlined_call_operand.hbm [shape: f32[8,256], index: 2, kind: output, shape index: {}]
  %s3 = sld [smem:[#allocation0]]
  $region26: #{tpu_custom_call.1} parent=0
    _
  %s5 = ssub.s32 1, %s3
  %s6 = scalar_select 0, %s5, %s3
  $region1: #{tpu_custom_call.1} parent=0
    #allocation2 [shape = 'u8[65536]{0}', space=vmem, size = 0x10000, scoped, tag = 'input window, operand 0, single buffered']
    #allocation3 [shape = 's32[1]{0}', space=sflag, size = 0x4, scoped, tag = 'scoped memory for tpu_custom_call.1']
    #allocation4 [shape = 's32[1]{0}', space=sflag, size = 0x4, scoped, tag = 'scoped memory for tpu_custom_call.1']
    #allocation5 [shape = 'u8[262144]{0}', space=vmem, size = 0x40000, scoped, tag = 'input window, operand 1, single buffered']
    #allocation6 [shape = 's32[1]{0}', space=sflag, size = 0x4, scoped, tag = 'scoped memory for tpu_custom_call.1']
    #allocation7 [shape = 'u8[8192]{0}', space=vmem, size = 0x2000, scoped, tag = 'output window, operand 0, single buffered']
    %7 = vsyncpa [#allocation3], 0
    %8 = vsyncpa [#allocation6], 0
    %9 = vsyncpa [#allocation4], 0
    // Predicated region
    $region2: #{tpu_custom_call.1} parent=1 // pred_check
      _
    $region3: #{tpu_custom_call.1} parent=1 // pred_check_branch
      %11 = sbr.rel (0) target = $region5
    $region4: #{tpu_custom_call.1} parent=1 // pred_region
      %s13 = ssub.s32 2048, 2048
      %14 = vsyncadd [#allocation3], %s13
      %s15 = sshll.u32 [#allocation2], 4
      %s16 = int_to_ptr.vmem [resolvable:$true] %s15
      %21 = dma.hbm_to_vmem [thread:$0]  %s0, 2048, %s16, [#allocation3], 256, 256, 16
    $region5: #{tpu_custom_call.1} parent=1 // pred_fallthru
      _
    // Predicated region
    $region6: #{tpu_custom_call.1} parent=1 // pred_check
      _
    $region7: #{tpu_custom_call.1} parent=1 // pred_check_branch
      %23 = sbr.rel (0) target = $region9
    $region8: #{tpu_custom_call.1} parent=1 // pred_region
      %s25 = ssub.s32 8192, 8192
      %26 = vsyncadd [#allocation6], %s25
      %s27 = sshll.u32 [#allocation5], 4
      %s28 = int_to_ptr.vmem [resolvable:$true] %s27
      %33 = dma.hbm_to_vmem [thread:$0]  %s1, 8192, %s28, [#allocation6], 256, 256, 16
    $region9: #{tpu_custom_call.1} parent=1 // pred_fallthru
      _
    // Predicated region
    $region10: #{tpu_custom_call.1} parent=1 // pred_check
      _
    $region11: #{tpu_custom_call.1} parent=1 // pred_check_branch
      %35 = sbr.rel (0) target = $region13
    $region12: #{tpu_custom_call.1} parent=1 // pred_region
      %36 = dma.done [#allocation3], 2048
    $region13: #{tpu_custom_call.1} parent=1 // pred_fallthru
      _
    // Predicated region
    $region14: #{tpu_custom_call.1} parent=1 // pred_check
      _
    $region15: #{tpu_custom_call.1} parent=1 // pred_check_branch
      %38 = sbr.rel (0) target = $region17
    $region16: #{tpu_custom_call.1} parent=1 // pred_region
      %39 = dma.done [#allocation6], 8192
    $region17: #{tpu_custom_call.1} parent=1 // pred_fallthru
      _
    %v40 = vld [vmem:[#allocation5] sm:$0xff]
    %v41 = vld [vmem:[#allocation5 + $0x8] sm:$0xff]
    %v42 = vld [vmem:[#allocation5 + $0x10] sm:$0xff]
    %v43 = vld [vmem:[#allocation5 + $0x18] sm:$0xff]
    %v44 = vld [vmem:[#allocation5 + $0x20] sm:$0xff]
    %v45 = vld [vmem:[#allocation5 + $0x28] sm:$0xff]
    %v46 = vld [vmem:[#allocation5 + $0x30] sm:$0xff]
    %v47 = vld [vmem:[#allocation5 + $0x38] sm:$0xff]
    %v48 = vld [vmem:[#allocation5 + $0x40] sm:$0xff]
    %v49 = vld [vmem:[#allocation5 + $0x48] sm:$0xff]
    %v50 = vld [vmem:[#allocation5 + $0x50] sm:$0xff]
    %v51 = vld [vmem:[#allocation5 + $0x58] sm:$0xff]
    %v52 = vld [vmem:[#allocation5 + $0x60] sm:$0xff]
    %v53 = vld [vmem:[#allocation5 + $0x68] sm:$0xff]
    %v54 = vld [vmem:[#allocation5 + $0x70] sm:$0xff]
    %v55 = vld [vmem:[#allocation5 + $0x78] sm:$0xff]
    %v56 = vld [vmem:[#allocation5 + $0x80] sm:$0xff]
    %v57 = vld [vmem:[#allocation5 + $0x88] sm:$0xff]
    %v58 = vld [vmem:[#allocation5 + $0x90] sm:$0xff]
    %v59 = vld [vmem:[#allocation5 + $0x98] sm:$0xff]
    %v60 = vld [vmem:[#allocation5 + $0xa0] sm:$0xff]
    %v61 = vld [vmem:[#allocation5 + $0xa8] sm:$0xff]
    %v62 = vld [vmem:[#allocation5 + $0xb0] sm:$0xff]
    %v63 = vld [vmem:[#allocation5 + $0xb8] sm:$0xff]
    %v64 = vld [vmem:[#allocation5 + $0xc0] sm:$0xff]
    %v65 = vld [vmem:[#allocation5 + $0xc8] sm:$0xff]
    %v66 = vld [vmem:[#allocation5 + $0xd0] sm:$0xff]
    %v67 = vld [vmem:[#allocation5 + $0xd8] sm:$0xff]
    %v68 = vld [vmem:[#allocation5 + $0xe0] sm:$0xff]
    %v69 = vld [vmem:[#allocation5 + $0xe8] sm:$0xff]
    %v70 = vld [vmem:[#allocation5 + $0xf0] sm:$0xff]
    %v71 = vld [vmem:[#allocation5 + $0xf8] sm:$0xff]
    %v72 = vld [vmem:[#allocation5 + $0x100] sm:$0xff]
    %v73 = vld [vmem:[#allocation5 + $0x108] sm:$0xff]
    %v74 = vld [vmem:[#allocation5 + $0x110] sm:$0xff]
    %v75 = vld [vmem:[#allocation5 + $0x118] sm:$0xff]
    %v76 = vld [vmem:[#allocation5 + $0x120] sm:$0xff]
    %v77 = vld [vmem:[#allocation5 + $0x128] sm:$0xff]
    %v78 = vld [vmem:[#allocation5 + $0x130] sm:$0xff]
    %v79 = vld [vmem:[#allocation5 + $0x138] sm:$0xff]
    %v80 = vld [vmem:[#allocation5 + $0x140] sm:$0xff]
    %v81 = vld [vmem:[#allocation5 + $0x148] sm:$0xff]
    %v82 = vld [vmem:[#allocation5 + $0x150] sm:$0xff]
    %v83 = vld [vmem:[#allocation5 + $0x158] sm:$0xff]
    %v84 = vld [vmem:[#allocation5 + $0x160] sm:$0xff]
    %v85 = vld [vmem:[#allocation5 + $0x168] sm:$0xff]
    %v86 = vld [vmem:[#allocation5 + $0x170] sm:$0xff]
    %v87 = vld [vmem:[#allocation5 + $0x178] sm:$0xff]
    %v88 = vld [vmem:[#allocation5 + $0x180] sm:$0xff]
    %v89 = vld [vmem:[#allocation5 + $0x188] sm:$0xff]
    %v90 = vld [vmem:[#allocation5 + $0x190] sm:$0xff]
    %v91 = vld [vmem:[#allocation5 + $0x198] sm:$0xff]
    %v92 = vld [vmem:[#allocation5 + $0x1a0] sm:$0xff]
    %v93 = vld [vmem:[#allocation5 + $0x1a8] sm:$0xff]
    %v94 = vld [vmem:[#allocation5 + $0x1b0] sm:$0xff]
    %v95 = vld [vmem:[#allocation5 + $0x1b8] sm:$0xff]
    %v96 = vld [vmem:[#allocation5 + $0x1c0] sm:$0xff]
    %v97 = vld [vmem:[#allocation5 + $0x1c8] sm:$0xff]
    %v98 = vld [vmem:[#allocation5 + $0x1d0] sm:$0xff]
    %v99 = vld [vmem:[#allocation5 + $0x1d8] sm:$0xff]
    %v100 = vld [vmem:[#allocation5 + $0x1e0] sm:$0xff]
    %v101 = vld [vmem:[#allocation5 + $0x1e8] sm:$0xff]
    %v102 = vld [vmem:[#allocation5 + $0x1f0] sm:$0xff]
    %v103 = vld [vmem:[#allocation5 + $0x1f8] sm:$0xff]
    %v104 = vld [vmem:[#allocation2] sm:$0xff]
    %v105 = vld [vmem:[#allocation2 + $0x8] sm:$0xff]
    %106 = vmatprep.subr.mxu0 %v41
    %107 = vmatpush1.msra.mxu0 %v40
    %108 = vmatprep.subr.mxu0 %v43
    %109 = vmatpush1.msra.mxu0 %v42
    %110 = vmatprep.subr.mxu0 %v45
    %111 = vmatpush1.msra.mxu0 %v44
    %112 = vmatprep.subr.mxu0 %v47
    %113 = vmatpush1.msra.mxu0 %v46
    %114 = vmatprep.subr.mxu0 %v49
    %115 = vmatpush1.msra.mxu0 %v48
    %116 = vmatprep.subr.mxu0 %v51
    %117 = vmatpush1.msra.mxu0 %v50
    %118 = vmatprep.subr.mxu0 %v53
    %119 = vmatpush1.msra.mxu0 %v52
    %120 = vmatprep.subr.mxu0 %v55
    %121 = vmatpush1.msra.mxu0 %v54
    %122 = vmatprep.subr.mxu0 %v57
    %123 = vmatpush1.msra.mxu0 %v56
    %124 = vmatprep.subr.mxu0 %v59
    %125 = vmatpush1.msra.mxu0 %v58
    %126 = vmatprep.subr.mxu0 %v61
    %127 = vmatpush1.msra.mxu0 %v60
    %128 = vmatprep.subr.mxu0 %v63
    %129 = vmatpush1.msra.mxu0 %v62
    %130 = vmatprep.subr.mxu0 %v65
    %131 = vmatpush1.msra.mxu0 %v64
    %132 = vmatprep.subr.mxu0 %v67
    %133 = vmatpush1.msra.mxu0 %v66
    %134 = vmatprep.subr.mxu0 %v69
    %135 = vmatpush1.msra.mxu0 %v68
    %136 = vmatprep.subr.mxu0 %v71
    %137 = vmatpush1.msra.mxu0 %v70
    %138 = vmatprep.subr.mxu0 %v73
    %139 = vmatpush1.msra.mxu0 %v72
    %140 = vmatprep.subr.mxu0 %v75
    %141 = vmatpush1.msra.mxu0 %v74
    %142 = vmatprep.subr.mxu0 %v77
    %143 = vmatpush1.msra.mxu0 %v76
    %144 = vmatprep.subr.mxu0 %v79
    %145 = vmatpush1.msra.mxu0 %v78
    %146 = vmatprep.subr.mxu0 %v81
    %147 = vmatpush1.msra.mxu0 %v80
    %148 = vmatprep.subr.mxu0 %v83
    %149 = vmatpush1.msra.mxu0 %v82
    %150 = vmatprep.subr.mxu0 %v85
    %151 = vmatpush1.msra.mxu0 %v84
    %152 = vmatprep.subr.mxu0 %v87
    %153 = vmatpush1.msra.mxu0 %v86
    %154 = vmatprep.subr.mxu0 %v89
    %155 = vmatpush1.msra.mxu0 %v88
    %156 = vmatprep.subr.mxu0 %v91
    %157 = vmatpush1.msra.mxu0 %v90
    %158 = vmatprep.subr.mxu0 %v93
    %159 = vmatpush1.msra.mxu0 %v92
    %160 = vmatprep.subr.mxu0 %v95
    %161 = vmatpush1.msra.mxu0 %v94
    %162 = vmatprep.subr.mxu0 %v97
    %163 = vmatpush1.msra.mxu0 %v96
    %164 = vmatprep.subr.mxu0 %v99
    %165 = vmatpush1.msra.mxu0 %v98
    %166 = vmatprep.subr.mxu0 %v101
    %167 = vmatpush1.msra.mxu0 %v100
    %168 = vmatprep.subr.mxu0 %v103
    %169 = vmatpush1.msra.mxu0 %v102
    %170 = vmatprep.mubr.f32.mxu0 0.0
    %171 = vmatmul.mubr.f32.gmra.mrb[0].mxu0 0.0
    %v172 = vpop.f32.mrb[0].mxu0
    %v173 = vadd.f32 0.0, %v172
    %v174 = vpop.f32.mrb[0].mxu0
    %v175 = vadd.f32 0.0, %v174
    %176 = vdwg.mxu0
    %v177 = vadd.f32 %v104, %v173
    %v178 = vadd.f32 %v105, %v175
    %v179 = vtanh.pop %v177
    %v180 = vtanh.pop %v178
    %s181 = scalar_lea.vmem [#allocation2], 16
    %v182 = vld [vmem:[%s181] sm:$0xff]
    %v183 = vld [vmem:[%s181 + $0x8] sm:$0xff]
    %184 = vmatprep.subr.mxu0 %v41
    %185 = vmatpush1.msra.mxu0 %v40
    %186 = vmatprep.subr.mxu0 %v43
    %187 = vmatpush1.msra.mxu0 %v42
    %188 = vmatprep.subr.mxu0 %v45
    %189 = vmatpush1.msra.mxu0 %v44
    %190 = vmatprep.subr.mxu0 %v47
    %191 = vmatpush1.msra.mxu0 %v46
    %192 = vmatprep.subr.mxu0 %v49
    %193 = vmatpush1.msra.mxu0 %v48
    %194 = vmatprep.subr.mxu0 %v51
    %195 = vmatpush1.msra.mxu0 %v50
    %196 = vmatprep.subr.mxu0 %v53
    %197 = vmatpush1.msra.mxu0 %v52
    %198 = vmatprep.subr.mxu0 %v55
    %199 = vmatpush1.msra.mxu0 %v54
    %200 = vmatprep.subr.mxu0 %v57
    %201 = vmatpush1.msra.mxu0 %v56
    %202 = vmatprep.subr.mxu0 %v59
    %203 = vmatpush1.msra.mxu0 %v58
    %204 = vmatprep.subr.mxu0 %v61
    %205 = vmatpush1.msra.mxu0 %v60
    %206 = vmatprep.subr.mxu0 %v63
    %207 = vmatpush1.msra.mxu0 %v62
    %208 = vmatprep.subr.mxu0 %v65
    %209 = vmatpush1.msra.mxu0 %v64
    %210 = vmatprep.subr.mxu0 %v67
    %211 = vmatpush1.msra.mxu0 %v66
    %212 = vmatprep.subr.mxu0 %v69
    %213 = vmatpush1.msra.mxu0 %v68
    %214 = vmatprep.subr.mxu0 %v71
    %215 = vmatpush1.msra.mxu0 %v70
    %216 = vmatprep.subr.mxu0 %v73
    %217 = vmatpush1.msra.mxu0 %v72
    %218 = vmatprep.subr.mxu0 %v75
    %219 = vmatpush1.msra.mxu0 %v74
    %220 = vmatprep.subr.mxu0 %v77
    %221 = vmatpush1.msra.mxu0 %v76
    %222 = vmatprep.subr.mxu0 %v79
    %223 = vmatpush1.msra.mxu0 %v78
    %224 = vmatprep.subr.mxu0 %v81
    %225 = vmatpush1.msra.mxu0 %v80
    %226 = vmatprep.subr.mxu0 %v83
    %227 = vmatpush1.msra.mxu0 %v82
    %228 = vmatprep.subr.mxu0 %v85
    %229 = vmatpush1.msra.mxu0 %v84
    %230 = vmatprep.subr.mxu0 %v87
    %231 = vmatpush1.msra.mxu0 %v86
    %232 = vmatprep.subr.mxu0 %v89
    %233 = vmatpush1.msra.mxu0 %v88
    %234 = vmatprep.subr.mxu0 %v91
    %235 = vmatpush1.msra.mxu0 %v90
    %236 = vmatprep.subr.mxu0 %v93
    %237 = vmatpush1.msra.mxu0 %v92
    %238 = vmatprep.subr.mxu0 %v95
    %239 = vmatpush1.msra.mxu0 %v94
    %240 = vmatprep.subr.mxu0 %v97
    %241 = vmatpush1.msra.mxu0 %v96
    %242 = vmatprep.subr.mxu0 %v99
    %243 = vmatpush1.msra.mxu0 %v98
    %244 = vmatprep.subr.mxu0 %v101
    %245 = vmatpush1.msra.mxu0 %v100
    %246 = vmatprep.subr.mxu0 %v103
    %247 = vmatpush1.msra.mxu0 %v102
    %248 = vmatprep.mubr.f32.mxu0 %v180
    %249 = vmatmul.mubr.f32.gmra.mrb[0].mxu0 %v179
    %v250 = vpop.f32.mrb[0].mxu0
    %v251 = vadd.f32 0.0, %v250
    %v252 = vpop.f32.mrb[0].mxu0
    %v253 = vadd.f32 0.0, %v252
    %254 = vdwg.mxu0
    %v255 = vadd.f32 %v182, %v251
    %v256 = vadd.f32 %v183, %v253
    %v257 = vtanh.pop %v255
    %v258 = vtanh.pop %v256
    %s259 = scalar_lea.vmem [#allocation2], 32
    %v260 = vld [vmem:[%s259] sm:$0xff]
    %v261 = vld [vmem:[%s259 + $0x8] sm:$0xff]
    %262 = vmatprep.subr.mxu0 %v41
    %263 = vmatpush1.msra.mxu0 %v40
    %264 = vmatprep.subr.mxu0 %v43
    %265 = vmatpush1.msra.mxu0 %v42
    %266 = vmatprep.subr.mxu0 %v45
    %267 = vmatpush1.msra.mxu0 %v44
    %268 = vmatprep.subr.mxu0 %v47
    %269 = vmatpush1.msra.mxu0 %v46
    %270 = vmatprep.subr.mxu0 %v49
    %271 = vmatpush1.msra.mxu0 %v48
    %272 = vmatprep.subr.mxu0 %v51
    %273 = vmatpush1.msra.mxu0 %v50
    %274 = vmatprep.subr.mxu0 %v53
    %275 = vmatpush1.msra.mxu0 %v52
    %276 = vmatprep.subr.mxu0 %v55
    %277 = vmatpush1.msra.mxu0 %v54
    %278 = vmatprep.subr.mxu0 %v57
    %279 = vmatpush1.msra.mxu0 %v56
    %280 = vmatprep.subr.mxu0 %v59
    %281 = vmatpush1.msra.mxu0 %v58
    %282 = vmatprep.subr.mxu0 %v61
    %283 = vmatpush1.msra.mxu0 %v60
    %284 = vmatprep.subr.mxu0 %v63
    %285 = vmatpush1.msra.mxu0 %v62
    %286 = vmatprep.subr.mxu0 %v65
    %287 = vmatpush1.msra.mxu0 %v64
    %288 = vmatprep.subr.mxu0 %v67
    %289 = vmatpush1.msra.mxu0 %v66
    %290 = vmatprep.subr.mxu0 %v69
    %291 = vmatpush1.msra.mxu0 %v68
    %292 = vmatprep.subr.mxu0 %v71
    %293 = vmatpush1.msra.mxu0 %v70
    %294 = vmatprep.subr.mxu0 %v73
    %295 = vmatpush1.msra.mxu0 %v72
    %296 = vmatprep.subr.mxu0 %v75
    %297 = vmatpush1.msra.mxu0 %v74
    %298 = vmatprep.subr.mxu0 %v77
    %299 = vmatpush1.msra.mxu0 %v76
    %300 = vmatprep.subr.mxu0 %v79
    %301 = vmatpush1.msra.mxu0 %v78
    %302 = vmatprep.subr.mxu0 %v81
    %303 = vmatpush1.msra.mxu0 %v80
    %304 = vmatprep.subr.mxu0 %v83
    %305 = vmatpush1.msra.mxu0 %v82
    %306 = vmatprep.subr.mxu0 %v85
    %307 = vmatpush1.msra.mxu0 %v84
    %308 = vmatprep.subr.mxu0 %v87
    %309 = vmatpush1.msra.mxu0 %v86
    %310 = vmatprep.subr.mxu0 %v89
    %311 = vmatpush1.msra.mxu0 %v88
    %312 = vmatprep.subr.mxu0 %v91
    %313 = vmatpush1.msra.mxu0 %v90
    %314 = vmatprep.subr.mxu0 %v93
    %315 = vmatpush1.msra.mxu0 %v92
    %316 = vmatprep.subr.mxu0 %v95
    %317 = vmatpush1.msra.mxu0 %v94
    %318 = vmatprep.subr.mxu0 %v97
    %319 = vmatpush1.msra.mxu0 %v96
    %320 = vmatprep.subr.mxu0 %v99
    %321 = vmatpush1.msra.mxu0 %v98
    %322 = vmatprep.subr.mxu0 %v101
    %323 = vmatpush1.msra.mxu0 %v100
    %324 = vmatprep.subr.mxu0 %v103
    %325 = vmatpush1.msra.mxu0 %v102
    %326 = vmatprep.mubr.f32.mxu0 %v258
    %327 = vmatmul.mubr.f32.gmra.mrb[0].mxu0 %v257
    %v328 = vpop.f32.mrb[0].mxu0
    %v329 = vadd.f32 0.0, %v328
    %v330 = vpop.f32.mrb[0].mxu0
    %v331 = vadd.f32 0.0, %v330
    %332 = vdwg.mxu0
    %v333 = vadd.f32 %v260, %v329
    %v334 = vadd.f32 %v261, %v331
    %v335 = vtanh.pop %v333
    %v336 = vtanh.pop %v334
    %s337 = scalar_lea.vmem [#allocation2], 48
    %v338 = vld [vmem:[%s337] sm:$0xff]
    %v339 = vld [vmem:[%s337 + $0x8] sm:$0xff]
    %340 = vmatprep.subr.mxu0 %v41
    %341 = vmatpush1.msra.mxu0 %v40
    %342 = vmatprep.subr.mxu0 %v43
    %343 = vmatpush1.msra.mxu0 %v42
    %344 = vmatprep.subr.mxu0 %v45
    %345 = vmatpush1.msra.mxu0 %v44
    %346 = vmatprep.subr.mxu0 %v47
    %347 = vmatpush1.msra.mxu0 %v46
    %348 = vmatprep.subr.mxu0 %v49
    %349 = vmatpush1.msra.mxu0 %v48
    %350 = vmatprep.subr.mxu0 %v51
    %351 = vmatpush1.msra.mxu0 %v50
    %352 = vmatprep.subr.mxu0 %v53
    %353 = vmatpush1.msra.mxu0 %v52
    %354 = vmatprep.subr.mxu0 %v55
    %355 = vmatpush1.msra.mxu0 %v54
    %356 = vmatprep.subr.mxu0 %v57
    %357 = vmatpush1.msra.mxu0 %v56
    %358 = vmatprep.subr.mxu0 %v59
    %359 = vmatpush1.msra.mxu0 %v58
    %360 = vmatprep.subr.mxu0 %v61
    %361 = vmatpush1.msra.mxu0 %v60
    %362 = vmatprep.subr.mxu0 %v63
    %363 = vmatpush1.msra.mxu0 %v62
    %364 = vmatprep.subr.mxu0 %v65
    %365 = vmatpush1.msra.mxu0 %v64
    %366 = vmatprep.subr.mxu0 %v67
    %367 = vmatpush1.msra.mxu0 %v66
    %368 = vmatprep.subr.mxu0 %v69
    %369 = vmatpush1.msra.mxu0 %v68
    %370 = vmatprep.subr.mxu0 %v71
    %371 = vmatpush1.msra.mxu0 %v70
    %372 = vmatprep.subr.mxu0 %v73
    %373 = vmatpush1.msra.mxu0 %v72
    %374 = vmatprep.subr.mxu0 %v75
    %375 = vmatpush1.msra.mxu0 %v74
    %376 = vmatprep.subr.mxu0 %v77
    %377 = vmatpush1.msra.mxu0 %v76
    %378 = vmatprep.subr.mxu0 %v79
    %379 = vmatpush1.msra.mxu0 %v78
    %380 = vmatprep.subr.mxu0 %v81
    %381 = vmatpush1.msra.mxu0 %v80
    %382 = vmatprep.subr.mxu0 %v83
    %383 = vmatpush1.msra.mxu0 %v82
    %384 = vmatprep.subr.mxu0 %v85
    %385 = vmatpush1.msra.mxu0 %v84
    %386 = vmatprep.subr.mxu0 %v87
    %387 = vmatpush1.msra.mxu0 %v86
    %388 = vmatprep.subr.mxu0 %v89
    %389 = vmatpush1.msra.mxu0 %v88
    %390 = vmatprep.subr.mxu0 %v91
    %391 = vmatpush1.msra.mxu0 %v90
    %392 = vmatprep.subr.mxu0 %v93
    %393 = vmatpush1.msra.mxu0 %v92
    %394 = vmatprep.subr.mxu0 %v95
    %395 = vmatpush1.msra.mxu0 %v94
    %396 = vmatprep.subr.mxu0 %v97
    %397 = vmatpush1.msra.mxu0 %v96
    %398 = vmatprep.subr.mxu0 %v99
    %399 = vmatpush1.msra.mxu0 %v98
    %400 = vmatprep.subr.mxu0 %v101
    %401 = vmatpush1.msra.mxu0 %v100
    %402 = vmatprep.subr.mxu0 %v103
    %403 = vmatpush1.msra.mxu0 %v102
    %404 = vmatprep.mubr.f32.mxu0 %v336
    %405 = vmatmul.mubr.f32.gmra.mrb[0].mxu0 %v335
    %v406 = vpop.f32.mrb[0].mxu0
    %v407 = vadd.f32 0.0, %v406
    %v408 = vpop.f32.mrb[0].mxu0
    %v409 = vadd.f32 0.0, %v408
    %410 = vdwg.mxu0
    %v411 = vadd.f32 %v338, %v407
    %v412 = vadd.f32 %v339, %v409
    %v413 = vtanh.pop %v411
    %v414 = vtanh.pop %v412
    %s415 = scalar_lea.vmem [#allocation2], 64
    %v416 = vld [vmem:[%s415] sm:$0xff]
    %v417 = vld [vmem:[%s415 + $0x8] sm:$0xff]
    %418 = vmatprep.subr.mxu0 %v41
    %419 = vmatpush1.msra.mxu0 %v40
    %420 = vmatprep.subr.mxu0 %v43
    %421 = vmatpush1.msra.mxu0 %v42
    %422 = vmatprep.subr.mxu0 %v45
    %423 = vmatpush1.msra.mxu0 %v44
    %424 = vmatprep.subr.mxu0 %v47
    %425 = vmatpush1.msra.mxu0 %v46
    %426 = vmatprep.subr.mxu0 %v49
    %427 = vmatpush1.msra.mxu0 %v48
    %428 = vmatprep.subr.mxu0 %v51
    %429 = vmatpush1.msra.mxu0 %v50
    %430 = vmatprep.subr.mxu0 %v53
    %431 = vmatpush1.msra.mxu0 %v52
    %432 = vmatprep.subr.mxu0 %v55
    %433 = vmatpush1.msra.mxu0 %v54
    %434 = vmatprep.subr.mxu0 %v57
    %435 = vmatpush1.msra.mxu0 %v56
    %436 = vmatprep.subr.mxu0 %v59
    %437 = vmatpush1.msra.mxu0 %v58
    %438 = vmatprep.subr.mxu0 %v61
    %439 = vmatpush1.msra.mxu0 %v60
    %440 = vmatprep.subr.mxu0 %v63
    %441 = vmatpush1.msra.mxu0 %v62
    %442 = vmatprep.subr.mxu0 %v65
    %443 = vmatpush1.msra.mxu0 %v64
    %444 = vmatprep.subr.mxu0 %v67
    %445 = vmatpush1.msra.mxu0 %v66
    %446 = vmatprep.subr.mxu0 %v69
    %447 = vmatpush1.msra.mxu0 %v68
    %448 = vmatprep.subr.mxu0 %v71
    %449 = vmatpush1.msra.mxu0 %v70
    %450 = vmatprep.subr.mxu0 %v73
    %451 = vmatpush1.msra.mxu0 %v72
    %452 = vmatprep.subr.mxu0 %v75
    %453 = vmatpush1.msra.mxu0 %v74
    %454 = vmatprep.subr.mxu0 %v77
    %455 = vmatpush1.msra.mxu0 %v76
    %456 = vmatprep.subr.mxu0 %v79
    %457 = vmatpush1.msra.mxu0 %v78
    %458 = vmatprep.subr.mxu0 %v81
    %459 = vmatpush1.msra.mxu0 %v80
    %460 = vmatprep.subr.mxu0 %v83
    %461 = vmatpush1.msra.mxu0 %v82
    %462 = vmatprep.subr.mxu0 %v85
    %463 = vmatpush1.msra.mxu0 %v84
    %464 = vmatprep.subr.mxu0 %v87
    %465 = vmatpush1.msra.mxu0 %v86
    %466 = vmatprep.subr.mxu0 %v89
    %467 = vmatpush1.msra.mxu0 %v88
    %468 = vmatprep.subr.mxu0 %v91
    %469 = vmatpush1.msra.mxu0 %v90
    %470 = vmatprep.subr.mxu0 %v93
    %471 = vmatpush1.msra.mxu0 %v92
    %472 = vmatprep.subr.mxu0 %v95
    %473 = vmatpush1.msra.mxu0 %v94
    %474 = vmatprep.subr.mxu0 %v97
    %475 = vmatpush1.msra.mxu0 %v96
    %476 = vmatprep.subr.mxu0 %v99
    %477 = vmatpush1.msra.mxu0 %v98
    %478 = vmatprep.subr.mxu0 %v101
    %479 = vmatpush1.msra.mxu0 %v100
    %480 = vmatprep.subr.mxu0 %v103
    %481 = vmatpush1.msra.mxu0 %v102
    %482 = vmatprep.mubr.f32.mxu0 %v414
    %483 = vmatmul.mubr.f32.gmra.mrb[0].mxu0 %v413
    %v484 = vpop.f32.mrb[0].mxu0
    %v485 = vadd.f32 0.0, %v484
    %v486 = vpop.f32.mrb[0].mxu0
    %v487 = vadd.f32 0.0, %v486
    %488 = vdwg.mxu0
    %v489 = vadd.f32 %v416, %v485
    %v490 = vadd.f32 %v417, %v487
    %v491 = vtanh.pop %v489
    %v492 = vtanh.pop %v490
    %s493 = scalar_lea.vmem [#allocation2], 80
    %v494 = vld [vmem:[%s493] sm:$0xff]
    %v495 = vld [vmem:[%s493 + $0x8] sm:$0xff]
    %496 = vmatprep.subr.mxu0 %v41
    %497 = vmatpush1.msra.mxu0 %v40
    %498 = vmatprep.subr.mxu0 %v43
    %499 = vmatpush1.msra.mxu0 %v42
    %500 = vmatprep.subr.mxu0 %v45
    %501 = vmatpush1.msra.mxu0 %v44
    %502 = vmatprep.subr.mxu0 %v47
    %503 = vmatpush1.msra.mxu0 %v46
    %504 = vmatprep.subr.mxu0 %v49
    %505 = vmatpush1.msra.mxu0 %v48
    %506 = vmatprep.subr.mxu0 %v51
    %507 = vmatpush1.msra.mxu0 %v50
    %508 = vmatprep.subr.mxu0 %v53
    %509 = vmatpush1.msra.mxu0 %v52
    %510 = vmatprep.subr.mxu0 %v55
    %511 = vmatpush1.msra.mxu0 %v54
    %512 = vmatprep.subr.mxu0 %v57
    %513 = vmatpush1.msra.mxu0 %v56
    %514 = vmatprep.subr.mxu0 %v59
    %515 = vmatpush1.msra.mxu0 %v58
    %516 = vmatprep.subr.mxu0 %v61
    %517 = vmatpush1.msra.mxu0 %v60
    %518 = vmatprep.subr.mxu0 %v63
    %519 = vmatpush1.msra.mxu0 %v62
    %520 = vmatprep.subr.mxu0 %v65
    %521 = vmatpush1.msra.mxu0 %v64
    %522 = vmatprep.subr.mxu0 %v67
    %523 = vmatpush1.msra.mxu0 %v66
    %524 = vmatprep.subr.mxu0 %v69
    %525 = vmatpush1.msra.mxu0 %v68
    %526 = vmatprep.subr.mxu0 %v71
    %527 = vmatpush1.msra.mxu0 %v70
    %528 = vmatprep.subr.mxu0 %v73
    %529 = vmatpush1.msra.mxu0 %v72
    %530 = vmatprep.subr.mxu0 %v75
    %531 = vmatpush1.msra.mxu0 %v74
    %532 = vmatprep.subr.mxu0 %v77
    %533 = vmatpush1.msra.mxu0 %v76
    %534 = vmatprep.subr.mxu0 %v79
    %535 = vmatpush1.msra.mxu0 %v78
    %536 = vmatprep.subr.mxu0 %v81
    %537 = vmatpush1.msra.mxu0 %v80
    %538 = vmatprep.subr.mxu0 %v83
    %539 = vmatpush1.msra.mxu0 %v82
    %540 = vmatprep.subr.mxu0 %v85
    %541 = vmatpush1.msra.mxu0 %v84
    %542 = vmatprep.subr.mxu0 %v87
    %543 = vmatpush1.msra.mxu0 %v86
    %544 = vmatprep.subr.mxu0 %v89
    %545 = vmatpush1.msra.mxu0 %v88
    %546 = vmatprep.subr.mxu0 %v91
    %547 = vmatpush1.msra.mxu0 %v90
    %548 = vmatprep.subr.mxu0 %v93
    %549 = vmatpush1.msra.mxu0 %v92
    %550 = vmatprep.subr.mxu0 %v95
    %551 = vmatpush1.msra.mxu0 %v94
    %552 = vmatprep.subr.mxu0 %v97
    %553 = vmatpush1.msra.mxu0 %v96
    %554 = vmatprep.subr.mxu0 %v99
    %555 = vmatpush1.msra.mxu0 %v98
    %556 = vmatprep.subr.mxu0 %v101
    %557 = vmatpush1.msra.mxu0 %v100
    %558 = vmatprep.subr.mxu0 %v103
    %559 = vmatpush1.msra.mxu0 %v102
    %560 = vmatprep.mubr.f32.mxu0 %v492
    %561 = vmatmul.mubr.f32.gmra.mrb[0].mxu0 %v491
    %v562 = vpop.f32.mrb[0].mxu0
    %v563 = vadd.f32 0.0, %v562
    %v564 = vpop.f32.mrb[0].mxu0
    %v565 = vadd.f32 0.0, %v564
    %566 = vdwg.mxu0
    %v567 = vadd.f32 %v494, %v563
    %v568 = vadd.f32 %v495, %v565
    %v569 = vtanh.pop %v567
    %v570 = vtanh.pop %v568
    %s571 = scalar_lea.vmem [#allocation2], 96
    %v572 = vld [vmem:[%s571] sm:$0xff]
    %v573 = vld [vmem:[%s571 + $0x8] sm:$0xff]
    %574 = vmatprep.subr.mxu0 %v41
    %575 = vmatpush1.msra.mxu0 %v40
    %576 = vmatprep.subr.mxu0 %v43
    %577 = vmatpush1.msra.mxu0 %v42
    %578 = vmatprep.subr.mxu0 %v45
    %579 = vmatpush1.msra.mxu0 %v44
    %580 = vmatprep.subr.mxu0 %v47
    %581 = vmatpush1.msra.mxu0 %v46
    %582 = vmatprep.subr.mxu0 %v49
    %583 = vmatpush1.msra.mxu0 %v48
    %584 = vmatprep.subr.mxu0 %v51
    %585 = vmatpush1.msra.mxu0 %v50
    %586 = vmatprep.subr.mxu0 %v53
    %587 = vmatpush1.msra.mxu0 %v52
    %588 = vmatprep.subr.mxu0 %v55
    %589 = vmatpush1.msra.mxu0 %v54
    %590 = vmatprep.subr.mxu0 %v57
    %591 = vmatpush1.msra.mxu0 %v56
    %592 = vmatprep.subr.mxu0 %v59
    %593 = vmatpush1.msra.mxu0 %v58
    %594 = vmatprep.subr.mxu0 %v61
    %595 = vmatpush1.msra.mxu0 %v60
    %596 = vmatprep.subr.mxu0 %v63
    %597 = vmatpush1.msra.mxu0 %v62
    %598 = vmatprep.subr.mxu0 %v65
    %599 = vmatpush1.msra.mxu0 %v64
    %600 = vmatprep.subr.mxu0 %v67
    %601 = vmatpush1.msra.mxu0 %v66
    %602 = vmatprep.subr.mxu0 %v69
    %603 = vmatpush1.msra.mxu0 %v68
    %604 = vmatprep.subr.mxu0 %v71
    %605 = vmatpush1.msra.mxu0 %v70
    %606 = vmatprep.subr.mxu0 %v73
    %607 = vmatpush1.msra.mxu0 %v72
    %608 = vmatprep.subr.mxu0 %v75
    %609 = vmatpush1.msra.mxu0 %v74
    %610 = vmatprep.subr.mxu0 %v77
    %611 = vmatpush1.msra.mxu0 %v76
    %612 = vmatprep.subr.mxu0 %v79
    %613 = vmatpush1.msra.mxu0 %v78
    %614 = vmatprep.subr.mxu0 %v81
    %615 = vmatpush1.msra.mxu0 %v80
    %616 = vmatprep.subr.mxu0 %v83
    %617 = vmatpush1.msra.mxu0 %v82
    %618 = vmatprep.subr.mxu0 %v85
    %619 = vmatpush1.msra.mxu0 %v84
    %620 = vmatprep.subr.mxu0 %v87
    %621 = vmatpush1.msra.mxu0 %v86
    %622 = vmatprep.subr.mxu0 %v89
    %623 = vmatpush1.msra.mxu0 %v88
    %624 = vmatprep.subr.mxu0 %v91
    %625 = vmatpush1.msra.mxu0 %v90
    %626 = vmatprep.subr.mxu0 %v93
    %627 = vmatpush1.msra.mxu0 %v92
    %628 = vmatprep.subr.mxu0 %v95
    %629 = vmatpush1.msra.mxu0 %v94
    %630 = vmatprep.subr.mxu0 %v97
    %631 = vmatpush1.msra.mxu0 %v96
    %632 = vmatprep.subr.mxu0 %v99
    %633 = vmatpush1.msra.mxu0 %v98
    %634 = vmatprep.subr.mxu0 %v101
    %635 = vmatpush1.msra.mxu0 %v100
    %636 = vmatprep.subr.mxu0 %v103
    %637 = vmatpush1.msra.mxu0 %v102
    %638 = vmatprep.mubr.f32.mxu0 %v570
    %639 = vmatmul.mubr.f32.gmra.mrb[0].mxu0 %v569
    %v640 = vpop.f32.mrb[0].mxu0
    %v641 = vadd.f32 0.0, %v640
    %v642 = vpop.f32.mrb[0].mxu0
    %v643 = vadd.f32 0.0, %v642
    %644 = vdwg.mxu0
    %v645 = vadd.f32 %v572, %v641
    %v646 = vadd.f32 %v573, %v643
    %v647 = vtanh.pop %v645
    %v648 = vtanh.pop %v646
    %s649 = scalar_lea.vmem [#allocation2], 112
    %v650 = vld [vmem:[%s649] sm:$0xff]
    %v651 = vld [vmem:[%s649 + $0x8] sm:$0xff]
    %652 = vmatprep.subr.mxu0 %v41
    %653 = vmatpush1.msra.mxu0 %v40
    %654 = vmatprep.subr.mxu0 %v43
    %655 = vmatpush1.msra.mxu0 %v42
    %656 = vmatprep.subr.mxu0 %v45
    %657 = vmatpush1.msra.mxu0 %v44
    %658 = vmatprep.subr.mxu0 %v47
    %659 = vmatpush1.msra.mxu0 %v46
    %660 = vmatprep.subr.mxu0 %v49
    %661 = vmatpush1.msra.mxu0 %v48
    %662 = vmatprep.subr.mxu0 %v51
    %663 = vmatpush1.msra.mxu0 %v50
    %664 = vmatprep.subr.mxu0 %v53
    %665 = vmatpush1.msra.mxu0 %v52
    %666 = vmatprep.subr.mxu0 %v55
    %667 = vmatpush1.msra.mxu0 %v54
    %668 = vmatprep.subr.mxu0 %v57
    %669 = vmatpush1.msra.mxu0 %v56
    %670 = vmatprep.subr.mxu0 %v59
    %671 = vmatpush1.msra.mxu0 %v58
    %672 = vmatprep.subr.mxu0 %v61
    %673 = vmatpush1.msra.mxu0 %v60
    %674 = vmatprep.subr.mxu0 %v63
    %675 = vmatpush1.msra.mxu0 %v62
    %676 = vmatprep.subr.mxu0 %v65
    %677 = vmatpush1.msra.mxu0 %v64
    %678 = vmatprep.subr.mxu0 %v67
    %679 = vmatpush1.msra.mxu0 %v66
    %680 = vmatprep.subr.mxu0 %v69
    %681 = vmatpush1.msra.mxu0 %v68
    %682 = vmatprep.subr.mxu0 %v71
    %683 = vmatpush1.msra.mxu0 %v70
    %684 = vmatprep.subr.mxu0 %v73
    %685 = vmatpush1.msra.mxu0 %v72
    %686 = vmatprep.subr.mxu0 %v75
    %687 = vmatpush1.msra.mxu0 %v74
    %688 = vmatprep.subr.mxu0 %v77
    %689 = vmatpush1.msra.mxu0 %v76
    %690 = vmatprep.subr.mxu0 %v79
    %691 = vmatpush1.msra.mxu0 %v78
    %692 = vmatprep.subr.mxu0 %v81
    %693 = vmatpush1.msra.mxu0 %v80
    %694 = vmatprep.subr.mxu0 %v83
    %695 = vmatpush1.msra.mxu0 %v82
    %696 = vmatprep.subr.mxu0 %v85
    %697 = vmatpush1.msra.mxu0 %v84
    %698 = vmatprep.subr.mxu0 %v87
    %699 = vmatpush1.msra.mxu0 %v86
    %700 = vmatprep.subr.mxu0 %v89
    %701 = vmatpush1.msra.mxu0 %v88
    %702 = vmatprep.subr.mxu0 %v91
    %703 = vmatpush1.msra.mxu0 %v90
    %704 = vmatprep.subr.mxu0 %v93
    %705 = vmatpush1.msra.mxu0 %v92
    %706 = vmatprep.subr.mxu0 %v95
    %707 = vmatpush1.msra.mxu0 %v94
    %708 = vmatprep.subr.mxu0 %v97
    %709 = vmatpush1.msra.mxu0 %v96
    %710 = vmatprep.subr.mxu0 %v99
    %711 = vmatpush1.msra.mxu0 %v98
    %712 = vmatprep.subr.mxu0 %v101
    %713 = vmatpush1.msra.mxu0 %v100
    %714 = vmatprep.subr.mxu0 %v103
    %715 = vmatpush1.msra.mxu0 %v102
    %716 = vmatprep.mubr.f32.mxu0 %v648
    %717 = vmatmul.mubr.f32.gmra.mrb[0].mxu0 %v647
    %v718 = vpop.f32.mrb[0].mxu0
    %v719 = vadd.f32 0.0, %v718
    %v720 = vpop.f32.mrb[0].mxu0
    %v721 = vadd.f32 0.0, %v720
    %722 = vdwg.mxu0
    %v723 = vadd.f32 %v650, %v719
    %v724 = vadd.f32 %v651, %v721
    %v725 = vtanh.pop %v723
    %v726 = vtanh.pop %v724
    %727 = vst [vmem:[#allocation7] sm:$0xff] %v725
    %728 = vst [vmem:[#allocation7 + $0x8] sm:$0xff] %v726
    // Predicated region
    $region18: #{tpu_custom_call.1} parent=1 // pred_check
      _
    $region19: #{tpu_custom_call.1} parent=1 // pred_check_branch
      %730 = sbr.rel (0) target = $region21
    $region20: #{tpu_custom_call.1} parent=1 // pred_region
      %s732 = ssub.s32 256, 256
      %733 = vsyncadd [#allocation4], %s732
      %s735 = sshll.u32 [#allocation7], 4
      %s736 = int_to_ptr.vmem [resolvable:$true] %s735
      %738 = dma.vmem_to_hbm [thread:$0]  %s736, 256, %s2, [#allocation4]
    $region21: #{tpu_custom_call.1} parent=1 // pred_fallthru
      _
    // Predicated region
    $region22: #{tpu_custom_call.1} parent=1 // pred_check
      _
    $region23: #{tpu_custom_call.1} parent=1 // pred_check_branch
      %740 = sbr.rel (0) target = $region25
    $region24: #{tpu_custom_call.1} parent=1 // pred_region
      %741 = dma.done [#allocation4], 256
    $region25: #{tpu_custom_call.1} parent=1 // pred_fallthru
      _
    %742 = vsyncpa [#allocation3], 1
    %743 = vsyncpa [#allocation6], 1
    %744 = vsyncpa [#allocation4], 1

</llo_original>
